<compile_context>
chip_gen: v7x
topology: tpu7x:2x2x1
jax: 0.10.0
libtpu: 0.0.40
codegen_flags: <defaults>
</compile_context>

<pallas_src>
import jax
import jax.numpy as jnp
from jax.experimental import pallas as pl
from jax.experimental.pallas import tpu as pltpu

_LANE = 128
_SUBLANE = 8
_SMALL_INPUT_BYTES = 4 * 1024 * 1024   # full-resident (no-grid) path cap; v7x-safe
_ROW_TILE = 1024                        # gridded path tile: 0.5 MiB in / 1 MiB out (f32)


def _cat_bool_kernel(x_ref, o_ref):
    # x_ref: (rows, 128) slab; o_ref: (2, rows, 128)
    x = x_ref[...]
    o_ref[0, :, :] = x                                   # first half: identity copy
    o_ref[1, :, :] = (x != 0).astype(o_ref.dtype)        # second half: bool(x) promoted


def cat_module_forward(x):
    """Reproduces CatModule.forward: concat(x, x.bool()) along dim 0 (result dtype = x.dtype)."""
    orig_shape = x.shape
    dtype = x.dtype
    n = x.size
    itemsize = jnp.dtype(dtype).itemsize
    small = (n * itemsize) <= _SMALL_INPUT_BYTES

    # Pad so the lane-dense slab keeps sublane-aligned, unmasked full-width stores:
    #   small path : rows multiple of 8
    #   large path : rows multiple of the row tile (grid divides evenly)
    align = (_SUBLANE * _LANE) if small else (_ROW_TILE * _LANE)
    pad = (-n) % align

    x_flat = jnp.ravel(x)
    if pad:  # not taken for (2, 4, 16, 16); kept for generality
        x_flat = jnp.pad(x_flat, (0, pad))
    rows = x_flat.size // _LANE
    x2d = x_flat.reshape(rows, _LANE)

    # Advisory cost: pure data movement (read x, write x and bool(x)).
    cost = pl.CostEstimate(
        flops=0,
        transcendentals=0,
        bytes_accessed=3 * rows * _LANE * itemsize,
    )

    if small:
        # Single full-array block resident in VMEM; no grid, no pipelining overhead.
        out3d = pl.pallas_call(
            _cat_bool_kernel,
            out_shape=jax.ShapeDtypeStruct((2, rows, _LANE), dtype),
            in_specs=[pl.BlockSpec(memory_space=pltpu.MemorySpace.VMEM)],
            out_specs=pl.BlockSpec(memory_space=pltpu.MemorySpace.VMEM),
            cost_estimate=cost,
        )(x2d)
    else:
        # Streaming, double-buffered path: 1-D grid over row blocks; one
        # lane-dense output BlockSpec covers both halves of the concat.
        tr = _ROW_TILE
        out3d = pl.pallas_call(
            _cat_bool_kernel,
            out_shape=jax.ShapeDtypeStruct((2, rows, _LANE), dtype),
            grid_spec=pltpu.PrefetchScalarGridSpec(
                num_scalar_prefetch=0,
                grid=(rows // tr,),
                in_specs=[pl.BlockSpec((tr, _LANE), lambda i: (i, 0))],
                out_specs=pl.BlockSpec((2, tr, _LANE), lambda i: (0, i, 0)),
            ),
            compiler_params=pltpu.CompilerParams(
                dimension_semantics=("parallel",),   # shards row blocks across v7x's 2 TCs
            ),
            cost_estimate=cost,
        )(x2d)

    # (2, rows, 128) row-major == concat along dim 0 of the flattened halves.
    out_flat = out3d.reshape(2, rows * _LANE)
    if pad:
        out_flat = out_flat[:, :n]
    out_shape = (2 * orig_shape[0],) + tuple(orig_shape[1:])
    return out_flat.reshape(out_shape)


if __name__ == "__main__":
    key = jax.random.PRNGKey(0)
    x = jax.random.normal(key, (2, 4, 16, 16), dtype=jnp.float32)

    out = cat_module_forward(x)
    out = jax.block_until_ready(out)

    # Reference: torch.cat([x, x.bool()], dim=0) with bool promoted to float32.
    y_ref = (x != 0).astype(x.dtype)
    expected = jnp.concatenate([x, y_ref], axis=0)

    assert out.shape == (4, 4, 16, 16), out.shape
    assert out.dtype == x.dtype, out.dtype
    assert bool(jnp.array_equal(out, expected)), "cat/bool mismatch"
    print("KERNEL_OK")
</pallas_src>

<mosaic_0001>
module attributes {stable_mosaic.version = 11 : i64} {
  func.func @_cat_bool_kernel(%arg0: memref<16x128xf32, #tpu.memory_space<vmem>>, %arg1: memref<2x16x128xf32, #tpu.memory_space<vmem>>) attributes {dimension_semantics = [], scalar_prefetch = 0 : i64, scratch_operands = 0 : i64, tpu.core_type = #tpu.core_type<tc>} {
    %c0 = arith.constant 0 : index
    %c0_0 = arith.constant 0 : index
    %0 = vector.load %arg0[%c0, %c0_0] : memref<16x128xf32, #tpu.memory_space<vmem>>, vector<16x128xf32>
    %c0_1 = arith.constant 0 : index
    %c0_2 = arith.constant 0 : index
    %c0_3 = arith.constant 0 : index
    %1 = vector.load %arg1[%c0_1, %c0_2, %c0_3] : memref<2x16x128xf32, #tpu.memory_space<vmem>>, vector<1x16x128xf32>
    %2 = vector.shape_cast %1 : vector<1x16x128xf32> to vector<16x128xf32>
    %3 = vector.shape_cast %0 : vector<16x128xf32> to vector<1x16x128xf32>
    tpu.vector_store %arg1[%c0_1, %c0_2, %c0_3], %3 {strides = array<i32>} : memref<2x16x128xf32, #tpu.memory_space<vmem>>, vector<1x16x128xf32>,
    %cst = arith.constant 0.000000e+00 : f32
    %4 = vector.broadcast %cst : f32 to vector<16x128xf32>
    %5 = arith.cmpf one, %0, %4 : vector<16x128xf32>
    %6 = arith.extui %5 : vector<16x128xi1> to vector<16x128xi32>
    %7 = arith.sitofp %6 : vector<16x128xi32> to vector<16x128xf32>
    %c1 = arith.constant 1 : index
    %c0_4 = arith.constant 0 : index
    %c0_5 = arith.constant 0 : index
    %8 = vector.load %arg1[%c1, %c0_4, %c0_5] : memref<2x16x128xf32, #tpu.memory_space<vmem>>, vector<1x16x128xf32>
    %9 = vector.shape_cast %8 : vector<1x16x128xf32> to vector<16x128xf32>
    %10 = vector.shape_cast %7 : vector<16x128xf32> to vector<1x16x128xf32>
    tpu.vector_store %arg1[%c1, %c0_4, %c0_5], %10 {strides = array<i32>} : memref<2x16x128xf32, #tpu.memory_space<vmem>>, vector<1x16x128xf32>,
    return
  }
}

</mosaic_0001>

<llo_original>
// kernel: tpu_custom_call.1
$region0: #{tpu_custom_call.1}
  #allocation0 [shape = 'u32[]', space=smem, size = 0x4, offset = 0x4, fixed_abs, tag = 'smem constant byte address 0x4 - core index']
  #allocation1 [shape = 'u32[144,128]{1,0:T(1,128)}', space=vmem, size = 0x12000, scoped, tag = 'internal scratch']
  %s0 = inlined_call_operand.hbm [shape: f32[16,128], index: 0, kind: input, shape index: {}]
  %s1 = inlined_call_operand.hbm [shape: f32[2,16,128], index: 1, kind: output, shape index: {}]
  %s2 = sld [smem:[#allocation0]]
  $region18: #{tpu_custom_call.1} parent=0
    _
  %s4 = ssub.s32 1, %s2
  %s5 = scalar_select 0, %s4, %s2
  $region1: #{tpu_custom_call.1} parent=0
    #allocation2 [shape = 'u8[8192]{0}', space=vmem, size = 0x2000, scoped, tag = 'input window, operand 0, single buffered']
    #allocation3 [shape = 's32[1]{0}', space=sflag, size = 0x4, scoped, tag = 'scoped memory for tpu_custom_call.1']
    #allocation4 [shape = 's32[1]{0}', space=sflag, size = 0x4, scoped, tag = 'scoped memory for tpu_custom_call.1']
    #allocation5 [shape = 'u8[16384]{0}', space=vmem, size = 0x4000, scoped, tag = 'output window, operand 0, single buffered']
    %6 = vsyncpa [#allocation3], 0
    %7 = vsyncpa [#allocation4], 0
    // Predicated region
    $region2: #{tpu_custom_call.1} parent=1 // pred_check
      _
    $region3: #{tpu_custom_call.1} parent=1 // pred_check_branch
      %9 = sbr.rel (0) target = $region5
    $region4: #{tpu_custom_call.1} parent=1 // pred_region
      %s11 = ssub.s32 256, 256
      %12 = vsyncadd [#allocation3], %s11
      %s13 = sshll.u32 [#allocation2], 4
      %s14 = int_to_ptr.vmem [resolvable:$true] %s13
      %19 = dma.hbm_to_vmem [thread:$0]  %s0, 256, %s14, [#allocation3], 128, 128, 8
    $region5: #{tpu_custom_call.1} parent=1 // pred_fallthru
      _
    // Predicated region
    $region6: #{tpu_custom_call.1} parent=1 // pred_check
      _
    $region7: #{tpu_custom_call.1} parent=1 // pred_check_branch
      %21 = sbr.rel (0) target = $region9
    $region8: #{tpu_custom_call.1} parent=1 // pred_region
      %22 = dma.done [#allocation3], 256
    $region9: #{tpu_custom_call.1} parent=1 // pred_fallthru
      _
    %v23 = vld [vmem:[#allocation2] sm:$0xff]
    %v24 = vld [vmem:[#allocation2 + $0x8] sm:$0xff]
    %25 = vst [vmem:[#allocation5] sm:$0xff] %v23
    %26 = vst [vmem:[#allocation5 + $0x8] sm:$0xff] %v24
    %vm27 = vcmp.ne.f32.partialorder %v23, 0.0
    %vm28 = vcmp.ne.f32.partialorder %v24, 0.0
    %v29 = vsel %vm27, 1, 0
    %v30 = vsel %vm28, 1, 0
    %v31 = vcvt.s32.f32 %v29
    %v32 = vcvt.s32.f32 %v30
    %s33 = scalar_lea.vmem [#allocation5], 16
    %34 = vst [vmem:[%s33] sm:$0xff] %v31
    %35 = vst [vmem:[%s33 + $0x8] sm:$0xff] %v32
    // Predicated region
    $region10: #{tpu_custom_call.1} parent=1 // pred_check
      _
    $region11: #{tpu_custom_call.1} parent=1 // pred_check_branch
      %37 = sbr.rel (0) target = $region13
    $region12: #{tpu_custom_call.1} parent=1 // pred_region
      %s39 = ssub.s32 512, 512
      %40 = vsyncadd [#allocation4], %s39
      %s41 = sshll.u32 [#allocation5], 4
      %s42 = int_to_ptr.vmem [resolvable:$true] %s41
      %47 = dma.vmem_to_hbm [thread:$0]  %s42, 512, %s1, [#allocation4], 128, 128, 8
    $region13: #{tpu_custom_call.1} parent=1 // pred_fallthru
      _
    // Predicated region
    $region14: #{tpu_custom_call.1} parent=1 // pred_check
      _
    $region15: #{tpu_custom_call.1} parent=1 // pred_check_branch
      %49 = sbr.rel (0) target = $region17
    $region16: #{tpu_custom_call.1} parent=1 // pred_region
      %50 = dma.done [#allocation4], 512
    $region17: #{tpu_custom_call.1} parent=1 // pred_fallthru
      _
    %51 = vsyncpa [#allocation3], 1
    %52 = vsyncpa [#allocation4], 1

</llo_original>
